<compile_context>
chip_gen: v5e
topology: v5e:2x2
jax: 0.10.0
libtpu: 0.0.40
codegen_flags: <defaults>
</compile_context>

<pallas_src>
import math

import jax
import jax.numpy as jnp
from jax.experimental import pallas as pl
from jax.experimental.pallas import tpu as pltpu


# ----------------------------- plain-JAX glue ------------------------------ #

def _round_up(x, m):
    return (x + m - 1) // m * m


def symmetrize_by_tril(A):
    """Symmetrize A (..., n, n) from its lower-triangular part (torch tril(-1) semantics)."""
    n = A.shape[-1]
    str_tril = jnp.tril(A, -1)
    diag_vec = jnp.diagonal(A, axis1=-2, axis2=-1)                 # (..., n)
    diag_emb = diag_vec[..., :, None] * jnp.eye(n, dtype=A.dtype)  # (..., n, n)
    return str_tril + jnp.swapaxes(str_tril, -1, -2) + diag_emb


def sym_logm(S, eps=1e-12):
    """Matrix log of SPD matrices (..., n, n) via eigendecomposition."""
    # TODO(synk): no Pallas equivalent of eigh; the matrix log stays in plain JAX glue.
    w, V = jnp.linalg.eigh(S)
    w = jnp.maximum(w, eps)   # guard against f32 eigenvalues <= 0 on ill-conditioned inputs
    return jnp.einsum('...ij,...j,...kj->...ik', V, jnp.log(w), V)


# ------------------------------ Pallas kernel ------------------------------ #

def _rmlr_kernel(s_ref, w_ref, b_ref, out_ref):
    """s_ref: (TB, m) streamed log(X) tile; w_ref: (m, Cp) resident folded weights;
       b_ref: (1, Cp) resident folded bias row; out_ref: (TB, Cp) logits tile."""
    out_ref[...] = (
        jnp.dot(s_ref[...], w_ref[...], preferred_element_type=jnp.float32)  # MXU
        + b_ref[...]                                                         # VPU broadcast add
    )


def spd_rmlr_forward(X, P, A, *, alpha=1.0, beta=0.0, block_b=256,
                     input_dtype=jnp.float32):
    """Forward of SPDRMLR (metric='LEM').  X: (N, n, n); P, A: (c, n, n) -> (N, c)."""
    N, n, _ = X.shape
    c = P.shape[0]
    m = n * n

    # ---- parameter prep + matrix log (glue) ----
    A_sym = symmetrize_by_tril(A)
    logX = sym_logm(X)
    logP = sym_logm(P)

    # ---- fold class-side constants (batch independent, done once) ----
    #   logits[b,k] = <logX_b, W_k>_F + bias_k
    #   W_k    = alpha*A_k + beta*tr(A_k)*I
    #   bias_k = -alpha*<logP_k, A_k>_F - beta*tr(logP_k)*tr(A_k)
    A32 = A_sym.astype(jnp.float32)
    P32 = logP.astype(jnp.float32)
    W = alpha * A32
    bias = -alpha * jnp.sum(P32 * A32, axis=(-2, -1))                       # (c,)
    if beta != 0.0:
        trA = jnp.trace(A32, axis1=-2, axis2=-1)                            # (c,)
        trP = jnp.trace(P32, axis1=-2, axis2=-1)                            # (c,)
        W = W + beta * trA[:, None, None] * jnp.eye(n, dtype=jnp.float32)
        bias = bias - beta * trP * trA

    # ---- tiling / padding ----
    c_pad = _round_up(c, 128)                 # lane-dense output stores
    N8 = _round_up(N, 8)
    block_b = min(block_b, N8)
    if N8 // block_b < 2 and N8 >= 16:        # keep >= 2 grid steps (v7x megacore)
        block_b = _round_up(N8 // 2, 8)
    N_pad = _round_up(N, block_b)

    S_flat = logX.reshape(N, m).astype(input_dtype)
    if N_pad != N:
        S_flat = jnp.pad(S_flat, ((0, N_pad - N), (0, 0)))
    Wt = jnp.pad(W.reshape(c, m).T.astype(input_dtype), ((0, 0), (0, c_pad - c)))  # (m, c_pad)
    bias_row = jnp.pad(bias.astype(jnp.float32), (0, c_pad - c))[None, :]          # (1, c_pad)

    # scoped-VMEM estimate: double-buffered S/out tiles + (double-buffered) resident W/bias
    est = (2 * block_b * m * S_flat.dtype.itemsize
           + 2 * block_b * c_pad * 4
           + 2 * (m * c_pad * Wt.dtype.itemsize + c_pad * 4))
    cp = dict(dimension_semantics=("parallel",))
    if est > 12 * (1 << 20):                  # only override when v5e's 16 MiB default is tight
        cp["vmem_limit_bytes"] = min(2 * est, 100 * (1 << 20))

    out = pl.pallas_call(
        _rmlr_kernel,
        out_shape=jax.ShapeDtypeStruct((N_pad, c_pad), jnp.float32),
        grid=(N_pad // block_b,),
        in_specs=[
            pl.BlockSpec((block_b, m), lambda i: (i, 0)),   # streamed log(X) batch tile
            pl.BlockSpec((m, c_pad), lambda i: (0, 0)),     # folded weights, resident
            pl.BlockSpec((1, c_pad), lambda i: (0, 0)),     # folded bias row, resident
        ],
        out_specs=pl.BlockSpec((block_b, c_pad), lambda i: (i, 0)),
        compiler_params=pltpu.CompilerParams(**cp),
    )(S_flat, Wt, bias_row)

    return out[:N, :c]


# ---------------------------------- main ----------------------------------- #

if __name__ == "__main__":
    key = jax.random.PRNGKey(0)
    N, n, c = 16, 16, 10          # batch, SPD size, number of classes
    k_a, k_x, k_p = jax.random.split(key, 3)

    # Parameter init mirroring the module's __init__:
    #   P: init_3Didentity  -> stack of identity matrices (SPD manifold param)
    #   A: init_matrix_uniform with fan_in = n**2, factor = 6
    P = jnp.tile(jnp.eye(n, dtype=jnp.float32)[None], (c, 1, 1))
    bound = math.sqrt(6.0 / (n ** 2))
    A = jax.random.uniform(k_a, (c, n, n), jnp.float32, minval=-bound, maxval=bound)

    # SPD inputs: M M^T / n + 0.5 I
    M = jax.random.normal(k_x, (N, n, n), jnp.float32)
    X = M @ jnp.swapaxes(M, -1, -2) / n + 0.5 * jnp.eye(n, dtype=jnp.float32)

    # Pure-JAX reference of the LEM RMLR
    def ref_rmlr(P_, alpha, beta):
        A_sym = symmetrize_by_tril(A)
        diff = sym_logm(X)[:, None] - sym_logm(P_)[None]                     # (N, c, n, n)
        return alpha * jnp.einsum('bcij,cij->bc', diff, A_sym) + beta * (
            jnp.trace(diff, axis1=-2, axis2=-1)
            * jnp.trace(A_sym, axis1=-2, axis2=-1)[None])

    # 1) module defaults (alpha=1, beta=0), f32 streamed inputs
    out = jax.block_until_ready(spd_rmlr_forward(X, P, A, alpha=1.0, beta=0.0))
    ref = ref_rmlr(P, 1.0, 0.0)
    assert out.shape == (N, c)
    assert jnp.allclose(out, ref, atol=1e-4, rtol=1e-4), "mismatch (alpha=1, beta=0)"

    # 2) exercise the trace/bias path: beta != 0 and a non-identity SPD P
    R = jax.random.normal(k_p, (c, n, n), jnp.float32)
    P2 = R @ jnp.swapaxes(R, -1, -2) / n + 0.5 * jnp.eye(n, dtype=jnp.float32)
    out2 = jax.block_until_ready(spd_rmlr_forward(X, P2, A, alpha=0.75, beta=0.25))
    ref2 = ref_rmlr(P2, 0.75, 0.25)
    assert jnp.allclose(out2, ref2, atol=1e-4, rtol=1e-4), "mismatch (alpha=.75, beta=.25)"

    # 3) bf16-streamed variant (halves HBM traffic; f32 MXU accumulation).
    #    Compare against a reference built from the same bf16-rounded operands.
    out3 = jax.block_until_ready(
        spd_rmlr_forward(X, P, A, alpha=1.0, beta=0.0, input_dtype=jnp.bfloat16))
    S_r = sym_logm(X).reshape(N, -1).astype(jnp.bfloat16).astype(jnp.float32)
    W_r = symmetrize_by_tril(A).reshape(c, -1).astype(jnp.bfloat16).astype(jnp.float32)
    ref3 = S_r @ W_r.T        # bias == 0 for identity P, alpha=1, beta=0
    assert jnp.allclose(out3, ref3, atol=1e-3, rtol=1e-3), "mismatch (bf16 inputs)"

    print("KERNEL_OK")
</pallas_src>

<mosaic_0001>
module attributes {stable_mosaic.version = 11 : i64} {
  func.func @_rmlr_kernel(%arg0: i32, %arg1: memref<8x256xf32, #tpu.memory_space<vmem>>, %arg2: memref<256x128xf32, #tpu.memory_space<vmem>>, %arg3: memref<1x128xf32, #tpu.memory_space<vmem>>, %arg4: memref<8x128xf32, #tpu.memory_space<vmem>>) attributes {dimension_semantics = [#tpu.dimension_semantics<parallel>], iteration_bounds = array<i64: 2>, scalar_prefetch = 0 : i64, scratch_operands = 0 : i64, tpu.core_type = #tpu.core_type<tc>, window_params = [{transform_indices = @transform_0, window_bounds = array<i64: 8, 256>}, {pipeline_mode = #tpu.pipeline_mode<synchronous>, transform_indices = @transform_1, window_bounds = array<i64: 256, 128>}, {pipeline_mode = #tpu.pipeline_mode<synchronous>, transform_indices = @transform_2, window_bounds = array<i64: 1, 128>}, {transform_indices = @transform_3, window_bounds = array<i64: 8, 128>}]} {
    %c0 = arith.constant 0 : index
    %c0_0 = arith.constant 0 : index
    %0 = vector.load %arg1[%c0, %c0_0] : memref<8x256xf32, #tpu.memory_space<vmem>>, vector<8x256xf32>
    %c0_1 = arith.constant 0 : index
    %c0_2 = arith.constant 0 : index
    %1 = vector.load %arg2[%c0_1, %c0_2] : memref<256x128xf32, #tpu.memory_space<vmem>>, vector<256x128xf32>
    %cst = arith.constant dense<0.000000e+00> : vector<8x128xf32>
    %2 = tpu.matmul %0, %1, %cst {dimension_numbers = #tpu.dot_dimension_numbers<[1], [0], [0], [1], [0, 0, 1, 1], [], []>} : vector<8x256xf32>, vector<256x128xf32>, vector<8x128xf32> -> vector<8x128xf32>
    %c0_3 = arith.constant 0 : index
    %c0_4 = arith.constant 0 : index
    %3 = vector.load %arg3[%c0_3, %c0_4] : memref<1x128xf32, #tpu.memory_space<vmem>>, vector<1x128xf32>
    %4 = vector.broadcast %3 : vector<1x128xf32> to vector<8x128xf32>
    %5 = arith.addf %2, %4 : vector<8x128xf32>
    %c0_5 = arith.constant 0 : index
    %c0_6 = arith.constant 0 : index
    %6 = vector.load %arg4[%c0_5, %c0_6] : memref<8x128xf32, #tpu.memory_space<vmem>>, vector<8x128xf32>
    tpu.vector_store %arg4[%c0_5, %c0_6], %5 {strides = array<i32>} : memref<8x128xf32, #tpu.memory_space<vmem>>, vector<8x128xf32>,
    return
  }
  func.func @transform_0(%arg0: i32) -> (i32, i32) {
    %c0_i32 = arith.constant 0 : i32
    %c0_i32_0 = arith.constant 0 : i32
    return %arg0, %c0_i32 : i32, i32
  }
  func.func @transform_1(%arg0: i32) -> (i32, i32) {
    %c0_i32 = arith.constant 0 : i32
    %c0_i32_0 = arith.constant 0 : i32
    %c0_i32_1 = arith.constant 0 : i32
    return %c0_i32, %c0_i32_0 : i32, i32
  }
  func.func @transform_2(%arg0: i32) -> (i32, i32) {
    %c0_i32 = arith.constant 0 : i32
    %c0_i32_0 = arith.constant 0 : i32
    %c0_i32_1 = arith.constant 0 : i32
    return %c0_i32, %c0_i32_0 : i32, i32
  }
  func.func @transform_3(%arg0: i32) -> (i32, i32) {
    %c0_i32 = arith.constant 0 : i32
    %c0_i32_0 = arith.constant 0 : i32
    return %arg0, %c0_i32 : i32, i32
  }
}

</mosaic_0001>

<llo_original>
// kernel: tpu_custom_call.1
$region0: #{tpu_custom_call.1}
  #allocation0 [shape = 'u32[]', space=smem, size = 0x4, offset = 0x4, fixed_abs, tag = 'smem constant byte address 0x4 - core index']
  #allocation1 [shape = 'u32[72,128]{1,0:T(1,128)}', space=vmem, size = 0x9000, scoped, tag = 'internal scratch']
  %s0 = inlined_call_operand.hbm [shape: f32[16,256], index: 0, kind: input, shape index: {}]
  %s1 = inlined_call_operand.hbm [shape: f32[256,128], index: 1, kind: input, shape index: {}]
  %s2 = inlined_call_operand.vmem [shape: f32[1,128], index: 2, kind: input, shape index: {}]
  %s3 = inlined_call_operand.hbm [shape: f32[16,128], index: 3, kind: output, shape index: {}]
  %s4 = sld [smem:[#allocation0]]
  $region53: #{tpu_custom_call.1} parent=0
    _
  %s6 = ssub.s32 1, %s4
  %s7 = scalar_select 0, %s6, %s4
  $region1: #{tpu_custom_call.1} parent=0
    #allocation2 [shape = 'u8[16384]{0}', space=vmem, size = 0x4000, scoped, tag = 'input window, operand 0']
    #allocation3 [shape = 's32[2]{0}', space=sflag, size = 0x8, scoped, tag = 'scoped memory for tpu_custom_call.1']
    #allocation4 [shape = 's32[2]{0}', space=sflag, size = 0x8, scoped, tag = 'scoped memory for tpu_custom_call.1']
    #allocation5 [shape = 'u8[131072]{0}', space=vmem, size = 0x20000, scoped, tag = 'input window, operand 1, single buffered']
    #allocation6 [shape = 's32[1]{0}', space=sflag, size = 0x4, scoped, tag = 'scoped memory for tpu_custom_call.1']
    #allocation7 [shape = 'u8[8192]{0}', space=vmem, size = 0x2000, scoped, tag = 'output window, operand 0']
    %8 = vsyncpa [#allocation3], 0
    %s9 = scalar_lea.sflag [#allocation3], 1
    %10 = vsyncpa %s9, 0
    %11 = vsyncpa [#allocation6], 0
    %12 = vsyncpa [#allocation4], 0
    %s13 = scalar_lea.sflag [#allocation4], 1
    %14 = vsyncpa %s13, 0
    loop: start=0, step=1, limit=4
    $region2: #{tpu_custom_call.1} parent=1 // loop_pre_header
      _
    $region3: #{tpu_custom_call.1} parent=1 // loop_header
      %s16 = sphi 0, %s20
      %p17 = scmp.ge.s32.totalorder %s16, 4
      %s26 = sphi 0, %s28
      %s29 = sphi 0, %s26
      %s30 = sphi 0, %s29
      %s46 = sphi 0, %s30
      %s50 = sphi 0, %s50
      %s52 = sphi 0, %s50
      %s53 = sphi 0, %s52
      %s67 = sphi 0, %s53
      %s71 = sphi 0, %s71
      %s73 = sphi 0, %s71
      %s74 = sphi 0, %s73
      %s88 = sphi 0, %s74
      %s94 = sphi 0, %s96
      %s97 = sphi 0, %s94
      %s98 = sphi 0, %s97
      %s114 = sphi 0, %s98
    $region4: #{tpu_custom_call.1} parent=1 // loop_header_branch
      %19 = sbr.rel (%p17) target = $region8
    $region5: #{tpu_custom_call.1} parent=1 // loop_body
      %s21 = ssub.s32 %s16, 1
      %s22 = ssub.s32 %s16, 2
      %s23 = sadd.s32 %s16, 1
      %s24 = ssub.s32 %s16, %s23
      %p25 = scmp.eq.s32.totalorder %s24, 0
      %s27 = sadd.s32 %s26, 1
      %s28 = scalar_select %p25, %s26, %s27
      %p31 = pneg %p25
      %p32 = scmp.eq.s32.totalorder %s16, 1
      %p33 = por %p31, %p32
      %p34 = scmp.ne.s32.totalorder %s26, %s29
      %p35 = scmp.eq.s32.totalorder %s16, 0
      %p36 = por %p34, %p35
      %p37 = scmp.ne.s32.totalorder %s26, %s29
      %p38 = scmp.eq.s32.totalorder %s21, 1
      %p39 = por %p37, %p38
      %p40 = scmp.ne.s32.totalorder %s29, %s30
      %p41 = scmp.eq.s32.totalorder %s21, 0
      %p42 = por %p40, %p41
      %p43 = scmp.ne.s32.totalorder %s29, %s30
      %p44 = scmp.eq.s32.totalorder %s22, 1
      %p45 = por %p43, %p44
      %p47 = scmp.ne.s32.totalorder %s30, %s46
      %p48 = scmp.eq.s32.totalorder %s22, 0
      %p49 = por %p47, %p48
      %s51 = sadd.s32 %s50, 1
      %p54 = scmp.eq.s32.totalorder %s16, 1
      %p55 = scmp.ne.s32.totalorder %s50, %s52
      %p56 = scmp.eq.s32.totalorder %s16, 0
      %p57 = por %p55, %p56
      %p58 = scmp.ne.s32.totalorder %s50, %s52
      %p59 = scmp.eq.s32.totalorder %s21, 1
      %p60 = por %p58, %p59
      %p61 = scmp.ne.s32.totalorder %s52, %s53
      %p62 = scmp.eq.s32.totalorder %s21, 0
      %p63 = por %p61, %p62
      %p64 = scmp.ne.s32.totalorder %s52, %s53
      %p65 = scmp.eq.s32.totalorder %s22, 1
      %p66 = por %p64, %p65
      %p68 = scmp.ne.s32.totalorder %s53, %s67
      %p69 = scmp.eq.s32.totalorder %s22, 0
      %p70 = por %p68, %p69
      %s72 = sadd.s32 %s71, 1
      %p75 = scmp.eq.s32.totalorder %s16, 1
      %p76 = scmp.ne.s32.totalorder %s71, %s73
      %p77 = scmp.eq.s32.totalorder %s16, 0
      %p78 = por %p76, %p77
      %p79 = scmp.ne.s32.totalorder %s71, %s73
      %p80 = scmp.eq.s32.totalorder %s21, 1
      %p81 = por %p79, %p80
      %p82 = scmp.ne.s32.totalorder %s73, %s74
      %p83 = scmp.eq.s32.totalorder %s21, 0
      %p84 = por %p82, %p83
      %p85 = scmp.ne.s32.totalorder %s73, %s74
      %p86 = scmp.eq.s32.totalorder %s22, 1
      %p87 = por %p85, %p86
      %p89 = scmp.ne.s32.totalorder %s74, %s88
      %p90 = scmp.eq.s32.totalorder %s22, 0
      %p91 = por %p89, %p90
      %s92 = ssub.s32 %s16, %s23
      %p93 = scmp.eq.s32.totalorder %s92, 0
      %s95 = sadd.s32 %s94, 1
      %s96 = scalar_select %p93, %s94, %s95
      %p99 = pneg %p93
      %p100 = scmp.eq.s32.totalorder %s16, 1
      %p101 = por %p99, %p100
      %p102 = scmp.ne.s32.totalorder %s94, %s97
      %p103 = scmp.eq.s32.totalorder %s16, 0
      %p104 = por %p102, %p103
      %p105 = scmp.ne.s32.totalorder %s94, %s97
      %p106 = scmp.eq.s32.totalorder %s21, 1
      %p107 = por %p105, %p106
      %p108 = scmp.ne.s32.totalorder %s97, %s98
      %p109 = scmp.eq.s32.totalorder %s21, 0
      %p110 = por %p108, %p109
      %p111 = scmp.ne.s32.totalorder %s97, %s98
      %p112 = scmp.eq.s32.totalorder %s22, 1
      %p113 = por %p111, %p112
      %p115 = scmp.ne.s32.totalorder %s98, %s114
      %p116 = scmp.eq.s32.totalorder %s22, 0
      %p117 = por %p115, %p116
      %p118 = scmp.le.s32.totalorder 1, %s16
      %p119 = scmp.lt.s32.totalorder %s16, 3
      %p120 = pnand %p118, %p119
      %p121 = pneg %p120
      // Predicated region
      $region9: #{tpu_custom_call.1} parent=5 // pred_check
        _
      $region10: #{tpu_custom_call.1} parent=5 // pred_check_branch
        %123 = sbr.rel (%p120) target = $region12
      $region11: #{tpu_custom_call.1} parent=5 // pred_region
        %s124 = ssub.s32 %s16, 1
        // Predicated region
        $region13: #{tpu_custom_call.1} parent=11 // pred_check
          %p125 = pneg %p63
        $region14: #{tpu_custom_call.1} parent=11 // pred_check_branch
          %127 = sbr.rel (%p125) target = $region16
        $region15: #{tpu_custom_call.1} parent=11 // pred_region
          %129 = vsyncadd [#allocation6], 0
          %s130 = sshll.u32 %s1, 4
          %s131 = int_to_ptr.hbm [resolvable:$true] %s130
          %s132 = sshll.u32 [#allocation5], 4
          %s133 = int_to_ptr.vmem [resolvable:$true] %s132
          %138 = dma.hbm_to_vmem [thread:$0]  %s131, 4096, %s133, [#allocation6], 128, 128, 8
        $region16: #{tpu_custom_call.1} parent=11 // pred_fallthru
          _
        // Predicated region
        $region17: #{tpu_custom_call.1} parent=11 // pred_check
          %p139 = pneg %p84
        $region18: #{tpu_custom_call.1} parent=11 // pred_check_branch
          %141 = sbr.rel (%p139) target = $region20
        $region19: #{tpu_custom_call.1} parent=11 // pred_region
          _
        $region20: #{tpu_custom_call.1} parent=11 // pred_fallthru
          _
      $region12: #{tpu_custom_call.1} parent=5 // pred_fallthru
        _
      %p142 = scmp.lt.s32.totalorder %s16, 2
      // Predicated region
      $region21: #{tpu_custom_call.1} parent=5 // pred_check
        %p143 = pneg %p142
      $region22: #{tpu_custom_call.1} parent=5 // pred_check_branch
        %145 = sbr.rel (%p143) target = $region24
      $region23: #{tpu_custom_call.1} parent=5 // pred_region
        // Predicated region
        $region25: #{tpu_custom_call.1} parent=23 // pred_check
          %p146 = pneg %p36
        $region26: #{tpu_custom_call.1} parent=23 // pred_check_branch
          %148 = sbr.rel (%p146) target = $region28
        $region27: #{tpu_custom_call.1} parent=23 // pred_region
          %s149 = sand.u32 %s26, 1
          %s150 = scalar_lea.sflag [#allocation3], %s149
          %s151 = sand.u32 %s26, 1
          %s152 = smul.addr %s151, 16
          %s153 = scalar_lea.vmem [#allocation2], %s152
          %155 = vsyncadd %s150, 0
          %s156 = smul.addr %s16, 2
          %s157 = smul.addr %s156, 8
          %s158 = scalar_lea.hbm %s0, %s157
          %s160 = sshll.u32 %s158, 4
          %s161 = int_to_ptr.hbm [resolvable:$true] %s160
          %s162 = sshll.u32 %s153, 4
          %s163 = int_to_ptr.vmem [resolvable:$true] %s162
          %165 = dma.hbm_to_vmem [thread:$0]  %s161, 256, %s163, %s150
        $region28: #{tpu_custom_call.1} parent=23 // pred_fallthru
          _
      $region24: #{tpu_custom_call.1} parent=5 // pred_fallthru
        _
      %p166 = scmp.le.s32.totalorder 1, %s16
      %p167 = scmp.lt.s32.totalorder %s16, 3
      %p168 = pnand %p166, %p167
      %p169 = pneg %p168
      // Predicated region
      $region29: #{tpu_custom_call.1} parent=5 // pred_check
        _
      $region30: #{tpu_custom_call.1} parent=5 // pred_check_branch
        %171 = sbr.rel (%p168) target = $region32
      $region31: #{tpu_custom_call.1} parent=5 // pred_region
        %s172 = ssub.s32 %s16, 1
        %s173 = sand.u32 %s29, 1
        %s174 = scalar_lea.sflag [#allocation3], %s173
        %s175 = sand.u32 %s29, 1
        %s176 = smul.addr %s175, 16
        %s177 = scalar_lea.vmem [#allocation2], %s176
        // Predicated region
        $region33: #{tpu_custom_call.1} parent=31 // pred_check
          %p178 = pneg %p42
        $region34: #{tpu_custom_call.1} parent=31 // pred_check_branch
          %180 = sbr.rel (%p178) target = $region36
        $region35: #{tpu_custom_call.1} parent=31 // pred_region
          %182 = dma.done %s174, 256
        $region36: #{tpu_custom_call.1} parent=31 // pred_fallthru
          _
        // Predicated region
        $region37: #{tpu_custom_call.1} parent=31 // pred_check
          %p183 = pneg %p63
        $region38: #{tpu_custom_call.1} parent=31 // pred_check_branch
          %185 = sbr.rel (%p183) target = $region40
        $region39: #{tpu_custom_call.1} parent=31 // pred_region
          %187 = dma.done [#allocation6], 4096
        $region40: #{tpu_custom_call.1} parent=31 // pred_fallthru
          _
        %s188 = sand.u32 %s29, 1
        %s189 = scalar_lea.sflag [#allocation3], %s188
        %s190 = sand.u32 %s29, 1
        %s191 = smul.addr %s190, 16
        %s192 = scalar_lea.vmem [#allocation2], %s191
        %p193 = pneg %p42
        %p194 = pneg %p39
        %p195 = pneg %p63
        %p196 = pneg %p60
        %p197 = pneg %p84
        %p198 = pneg %p81
        %p199 = pneg %p110
        %p200 = pneg %p107
        %s201 = sand.u32 %s97, 1
        %s202 = scalar_lea.sflag [#allocation4], %s201
        %s203 = sand.u32 %s97, 1
        %s204 = smul.addr %s203, 8
        %s205 = scalar_lea.vmem [#allocation7], %s204
        %v206 = vld [vmem:[%s177] sm:$0xff]
        %v207 = vld [vmem:[%s177 + $0x8] sm:$0xff]
        %v208 = vld [vmem:[#allocation5] sm:$0xff]
        %v209 = vld [vmem:[#allocation5 + $0x8] sm:$0xff]
        %v210 = vld [vmem:[#allocation5 + $0x10] sm:$0xff]
        %v211 = vld [vmem:[#allocation5 + $0x18] sm:$0xff]
        %v212 = vld [vmem:[#allocation5 + $0x20] sm:$0xff]
        %v213 = vld [vmem:[#allocation5 + $0x28] sm:$0xff]
        %v214 = vld [vmem:[#allocation5 + $0x30] sm:$0xff]
        %v215 = vld [vmem:[#allocation5 + $0x38] sm:$0xff]
        %v216 = vld [vmem:[#allocation5 + $0x40] sm:$0xff]
        %v217 = vld [vmem:[#allocation5 + $0x48] sm:$0xff]
        %v218 = vld [vmem:[#allocation5 + $0x50] sm:$0xff]
        %v219 = vld [vmem:[#allocation5 + $0x58] sm:$0xff]
        %v220 = vld [vmem:[#allocation5 + $0x60] sm:$0xff]
        %v221 = vld [vmem:[#allocation5 + $0x68] sm:$0xff]
        %v222 = vld [vmem:[#allocation5 + $0x70] sm:$0xff]
        %v223 = vld [vmem:[#allocation5 + $0x78] sm:$0xff]
        %v224 = vld [vmem:[#allocation5 + $0x80] sm:$0xff]
        %v225 = vld [vmem:[#allocation5 + $0x88] sm:$0xff]
        %v226 = vld [vmem:[#allocation5 + $0x90] sm:$0xff]
        %v227 = vld [vmem:[#allocation5 + $0x98] sm:$0xff]
        %v228 = vld [vmem:[#allocation5 + $0xa0] sm:$0xff]
        %v229 = vld [vmem:[#allocation5 + $0xa8] sm:$0xff]
        %v230 = vld [vmem:[#allocation5 + $0xb0] sm:$0xff]
        %v231 = vld [vmem:[#allocation5 + $0xb8] sm:$0xff]
        %v232 = vld [vmem:[#allocation5 + $0xc0] sm:$0xff]
        %v233 = vld [vmem:[#allocation5 + $0xc8] sm:$0xff]
        %v234 = vld [vmem:[#allocation5 + $0xd0] sm:$0xff]
        %v235 = vld [vmem:[#allocation5 + $0xd8] sm:$0xff]
        %v236 = vld [vmem:[#allocation5 + $0xe0] sm:$0xff]
        %v237 = vld [vmem:[#allocation5 + $0xe8] sm:$0xff]
        %v238 = vld [vmem:[#allocation5 + $0xf0] sm:$0xff]
        %v239 = vld [vmem:[#allocation5 + $0xf8] sm:$0xff]
        %v240 = vld [vmem:[%s2] sm:$0x1]
        %v242 = vperm.slane %v240, 0
        %244 = vmatpush.msra.mxu0 %v223
        %245 = vmatpush.msra.mxu0 %v222
        %246 = vmatpush.msra.mxu0 %v221
        %247 = vmatpush.msra.mxu0 %v220
        %248 = vmatpush.msra.mxu0 %v219
        %249 = vmatpush.msra.mxu0 %v218
        %250 = vmatpush.msra.mxu0 %v217
        %251 = vmatpush.msra.mxu0 %v216
        %252 = vmatpush.msra.mxu0 %v215
        %253 = vmatpush.msra.mxu0 %v214
        %254 = vmatpush.msra.mxu0 %v213
        %255 = vmatpush.msra.mxu0 %v212
        %256 = vmatpush.msra.mxu0 %v211
        %257 = vmatpush.msra.mxu0 %v210
        %258 = vmatpush.msra.mxu0 %v209
        %259 = vmatpush.msra.mxu0 %v208
        %260 = vmatmul.f32.gmra.mxu0 %v206
        %v261 = vpop.f32.mrf.mxu0
        %v262 = vadd.f32 %v242, %v261
        %263 = vdwg.mxu0
        %264 = vmatpush.msra.mxu0 %v239
        %265 = vmatpush.msra.mxu0 %v238
        %266 = vmatpush.msra.mxu0 %v237
        %267 = vmatpush.msra.mxu0 %v236
        %268 = vmatpush.msra.mxu0 %v235
        %269 = vmatpush.msra.mxu0 %v234
        %270 = vmatpush.msra.mxu0 %v233
        %271 = vmatpush.msra.mxu0 %v232
        %272 = vmatpush.msra.mxu0 %v231
        %273 = vmatpush.msra.mxu0 %v230
        %274 = vmatpush.msra.mxu0 %v229
        %275 = vmatpush.msra.mxu0 %v228
        %276 = vmatpush.msra.mxu0 %v227
        %277 = vmatpush.msra.mxu0 %v226
        %278 = vmatpush.msra.mxu0 %v225
        %279 = vmatpush.msra.mxu0 %v224
        %280 = vmatmul.f32.gmra.mxu0 %v207
        %v281 = vpop.f32.mrf.mxu0
        %v282 = vadd.f32 %v262, %v281
        %283 = vdwg.mxu0
        %284 = vst [vmem:[%s205] sm:$0xff] %v282
        %s285 = sand.u32 %s97, 1
        %s286 = scalar_lea.sflag [#allocation4], %s285
        %s287 = sand.u32 %s97, 1
        %s288 = smul.addr %s287, 8
        %s289 = scalar_lea.vmem [#allocation7], %s288
        // Predicated region
        $region41: #{tpu_custom_call.1} parent=31 // pred_check
          %p290 = pneg %p107
        $region42: #{tpu_custom_call.1} parent=31 // pred_check_branch
          %292 = sbr.rel (%p290) target = $region44
        $region43: #{tpu_custom_call.1} parent=31 // pred_region
          %294 = vsyncadd %s286, 0
          %s295 = smul.addr %s21, 8
          %s296 = scalar_lea.hbm %s3, %s295
          %s298 = sshll.u32 %s289, 4
          %s299 = int_to_ptr.vmem [resolvable:$true] %s298
          %s300 = sshll.u32 %s296, 4
          %s301 = int_to_ptr.hbm [resolvable:$true] %s300
          %303 = dma.vmem_to_hbm [thread:$0]  %s299, 128, %s301, %s286
        $region44: #{tpu_custom_call.1} parent=31 // pred_fallthru
          _
      $region32: #{tpu_custom_call.1} parent=5 // pred_fallthru
        _
      %p304 = scmp.le.s32.totalorder 2, %s16
      // Predicated region
      $region45: #{tpu_custom_call.1} parent=5 // pred_check
        %p305 = pneg %p304
      $region46: #{tpu_custom_call.1} parent=5 // pred_check_branch
        %307 = sbr.rel (%p305) target = $region48
      $region47: #{tpu_custom_call.1} parent=5 // pred_region
        %s308 = ssub.s32 %s16, 2
        // Predicated region
        $region49: #{tpu_custom_call.1} parent=47 // pred_check
          %p309 = pneg %p113
        $region50: #{tpu_custom_call.1} parent=47 // pred_check_branch
          %311 = sbr.rel (%p309) target = $region52
        $region51: #{tpu_custom_call.1} parent=47 // pred_region
          %s312 = sand.u32 %s98, 1
          %s313 = scalar_lea.sflag [#allocation4], %s312
          %s314 = sand.u32 %s98, 1
          %s315 = smul.addr %s314, 8
          %s316 = scalar_lea.vmem [#allocation7], %s315
          %318 = dma.done %s313, 128
        $region52: #{tpu_custom_call.1} parent=47 // pred_fallthru
          _
      $region48: #{tpu_custom_call.1} parent=5 // pred_fallthru
        _
    $region6: #{tpu_custom_call.1} parent=1 // loop_footer
      %s20 = sadd.s32 1, %s16
    $region7: #{tpu_custom_call.1} parent=1 // loop_footer_branch
      %15 = sbr.rel target = $region3
    $region8: #{tpu_custom_call.1} parent=1 // loop_exit
      _
    %319 = vsyncpa [#allocation3], 1
    %s320 = scalar_lea.sflag [#allocation3], 1
    %321 = vsyncpa %s320, 1
    %322 = vsyncpa [#allocation6], 1
    %323 = vsyncpa [#allocation4], 1
    %s324 = scalar_lea.sflag [#allocation4], 1
    %325 = vsyncpa %s324, 1

</llo_original>
